<compile_context>
chip_gen: v7x
topology: tpu7x:2x2x1
jax: 0.10.0
libtpu: 0.0.40
codegen_flags: <defaults>
</compile_context>

<pallas_src>
import functools
import math

import jax
import jax.numpy as jnp
from jax.experimental import pallas as pl
from jax.experimental.pallas import tpu as pltpu


def _copy_kernel(x_ref, o_ref):
    # The roll is expressed entirely in the input BlockSpec index_map.
    o_ref[...] = x_ref[...]


def _roll_kernel(x_ref, o_ref, *, flat_shift):
    # Whole flattened row resident in VMEM; single XLU lane rotation.
    o_ref[...] = pltpu.roll(x_ref[...], shift=flat_shift, axis=1)


def _sublane_multiple(dtype):
    # Native packed sublane tile: 8 for 4-byte dtypes, 16 for bf16/f16, 32 for int8/fp8.
    return max(8, 32 // jnp.dtype(dtype).itemsize)


def _vmem_capacity_bytes():
    try:
        return int(pltpu.get_tpu_info().vmem_capacity_bytes)
    except Exception:
        return 64 << 20  # conservative default (v7x-sized VMEM)


def _default_tile_budget(vmem_capacity):
    # ~8 MiB per tile on v7x (64 MiB VMEM), ~12 MiB on v5e/v6e (128 MiB VMEM).
    return int(min(12 << 20, max(2 << 20, vmem_capacity // 8)))


def _pick_batch_tile(num_rows, row_bytes, budget_bytes, sub):
    """Largest legal batch tile (full dim, or a multiple of `sub` dividing it) within budget."""
    candidates = {num_rows}
    c = sub
    while c < num_rows:
        if num_rows % c == 0:
            candidates.add(c)
        c += sub
    fitting = [c for c in candidates if c * row_bytes <= budget_bytes]
    return max(fitting) if fitting else min(candidates)


def _pick_lane_tile(g, itemsize, sub, budget_bytes):
    """Largest divisor of g that is a multiple of 128 and fits `sub` rows in budget."""
    k = g // 128
    divs = set()
    i = 1
    while i * i <= k:
        if k % i == 0:
            divs.add(128 * i)
            divs.add(128 * (k // i))
        i += 1
    divs = sorted(divs)
    fitting = [d for d in divs if sub * d * itemsize <= budget_bytes]
    return max(fitting) if fitting else divs[0]


def _ensure_two_steps(bt, num_rows, sub):
    """Prefer >= 2 grid steps on a lone batch axis so both v7x TensorCores get work."""
    if num_rows // bt >= 2:
        return bt
    c = ((bt - 1) // sub) * sub
    while c >= sub:
        if num_rows % c == 0:
            return c
        c -= sub
    return bt


def cyclic_shift(x, displacement, *, vmem_budget_bytes=None):
    """Pallas TPU equivalent of CyclicShift(displacement): torch.roll(x, displacement, dims=1)."""
    if x.ndim < 2:
        raise ValueError("cyclic_shift expects rank >= 2 (roll axis is dim 1)")

    orig_shape = x.shape
    B, N = orig_shape[0], orig_shape[1]
    R = int(math.prod(orig_shape[2:]))  # trailing feature size (1 if rank == 2)
    M = N * R

    shift = displacement % N if N else 0
    if shift == 0 or B == 0 or M == 0:
        # Identity: skip the kernel entirely (saves 2*B*M*itemsize of HBM traffic).
        return x

    flat_shift = shift * R          # roll of dim 1 by shift == roll of flattened (N*R) by shift*R
    x2 = x.reshape(B, M)            # contiguous reshape: free, lane-dense last dim

    itemsize = jnp.dtype(x.dtype).itemsize
    sub = _sublane_multiple(x.dtype)
    cap = _vmem_capacity_bytes()
    budget = int(vmem_budget_bytes) if vmem_budget_bytes else _default_tile_budget(cap)

    g = math.gcd(flat_shift, M)
    if g % 128 == 0:
        # Fast path: roll as a block permutation in the input index_map (pure DMA streaming).
        mt = _pick_lane_tile(g, itemsize, sub, budget)
        nb = M // mt
        # out block j takes input block (j - s) mod nb, where s = flat_shift // mt.
        off = (nb - flat_shift // mt) % nb
        bt = _pick_batch_tile(B, mt * itemsize, budget, sub)
        grid = (B // bt, nb)                     # nb >= 2 always (0 < flat_shift < M)
        in_specs = [pl.BlockSpec((bt, mt),
                                 lambda b, j, _off=off, _nb=nb: (b, (j + _off) % _nb))]
        out_specs = pl.BlockSpec((bt, mt), lambda b, j: (b, j))
        kernel = _copy_kernel
        semantics = ("parallel", "parallel")
        tile_bytes = bt * mt * itemsize
    else:
        # Fallback: whole flattened row per tile, single XLU roll.
        # TODO(synk): for non-128-aligned flat_shift with rows too large for VMEM,
        # tile the lane axis and stitch the roll from two index_map segments plus
        # an in-tile fix-up rotation instead of one full-row roll.
        bt = _pick_batch_tile(B, M * itemsize, budget, sub)
        bt = _ensure_two_steps(bt, B, sub)
        grid = (B // bt,)
        in_specs = [pl.BlockSpec((bt, M), lambda b: (b, 0))]
        out_specs = pl.BlockSpec((bt, M), lambda b: (b, 0))
        kernel = functools.partial(_roll_kernel, flat_shift=flat_shift)
        semantics = ("parallel",)
        tile_bytes = bt * M * itemsize

    # in + out, double-buffered, plus headroom; never clamp below what the
    # pipeline needs, never (normally) above ~3/4 of physical VMEM.
    needed = 4 * tile_bytes + (4 << 20)
    vmem_limit = int(min(max(needed, 32 << 20), max(3 * cap // 4, needed)))

    out2 = pl.pallas_call(
        kernel,
        out_shape=jax.ShapeDtypeStruct((B, M), x.dtype),
        grid_spec=pltpu.PrefetchScalarGridSpec(
            num_scalar_prefetch=0,
            grid=grid,
            in_specs=in_specs,
            out_specs=out_specs,
        ),
        compiler_params=pltpu.CompilerParams(
            dimension_semantics=semantics,
            vmem_limit_bytes=vmem_limit,
        ),
    )(x2)

    return out2.reshape(orig_shape)


if __name__ == "__main__":
    key = jax.random.PRNGKey(0)

    # 1) Swin-style negative shift, f32: exercises the index_map (block-permutation) fast path.
    B, N, D = 2, 16, 32
    x = jax.random.normal(key, (B, N, D), dtype=jnp.float32)
    out = jax.block_until_ready(cyclic_shift(x, -4))
    ref = jnp.roll(x, shift=-4, axis=1)
    assert out.shape == ref.shape and out.dtype == ref.dtype
    assert jnp.array_equal(out, ref)

    # 2) Shift whose flattened offset is not 128-aligned: exercises the XLU-roll fallback.
    out = jax.block_until_ready(cyclic_shift(x, 1))
    assert jnp.array_equal(out, jnp.roll(x, shift=1, axis=1))

    # 3) bf16 (packed dtype) on the fast path.
    xb = x.astype(jnp.bfloat16)
    out = jax.block_until_ready(cyclic_shift(xb, -4))
    assert jnp.array_equal(out, jnp.roll(xb, shift=-4, axis=1))

    # 4) Rank-4 input (b, h, w, c) with multiple lane blocks on the fast path.
    x4 = jax.random.normal(jax.random.PRNGKey(1), (2, 8, 8, 32), dtype=jnp.float32)
    out = jax.block_until_ready(cyclic_shift(x4, -3))
    assert jnp.array_equal(out, jnp.roll(x4, shift=-3, axis=1))

    # 5) Displacement that's a multiple of N: identity early-return (no kernel launch).
    out0 = jax.block_until_ready(cyclic_shift(x, 16))
    assert jnp.array_equal(out0, x)

    print("KERNEL_OK")
</pallas_src>

<mosaic_0001>
module attributes {stable_mosaic.version = 11 : i64} {
  func.func @_copy_kernel(%arg0: i32, %arg1: i32, %arg2: memref<2x128xf32, #tpu.memory_space<vmem>>, %arg3: memref<2x128xf32, #tpu.memory_space<vmem>>) attributes {dimension_semantics = [#tpu.dimension_semantics<parallel>, #tpu.dimension_semantics<parallel>], iteration_bounds = array<i64: 1, 4>, scalar_prefetch = 0 : i64, scratch_operands = 0 : i64, tpu.core_type = #tpu.core_type<tc>, window_params = [{transform_indices = @transform_0, window_bounds = array<i64: 2, 128>}, {transform_indices = @transform_1, window_bounds = array<i64: 2, 128>}]} {
    %c0 = arith.constant 0 : index
    %c0_0 = arith.constant 0 : index
    %0 = vector.load %arg2[%c0, %c0_0] : memref<2x128xf32, #tpu.memory_space<vmem>>, vector<2x128xf32>
    %c0_1 = arith.constant 0 : index
    %c0_2 = arith.constant 0 : index
    %1 = vector.load %arg3[%c0_1, %c0_2] : memref<2x128xf32, #tpu.memory_space<vmem>>, vector<2x128xf32>
    tpu.vector_store %arg3[%c0_1, %c0_2], %0 {strides = array<i32>} : memref<2x128xf32, #tpu.memory_space<vmem>>, vector<2x128xf32>,
    return
  }
  func.func @transform_0(%arg0: i32, %arg1: i32) -> (i32, i32) {
    %c1_i32 = arith.constant 1 : i32
    %0 = arith.addi %arg1, %c1_i32 : i32
    %c4_i32 = arith.constant 4 : i32
    %c0_i32 = arith.constant 0 : i32
    %1 = arith.cmpi eq, %c4_i32, %c0_i32 : i32
    %c1_i32_0 = arith.constant 1 : i32
    %2 = arith.select %1, %c1_i32_0, %c4_i32 : i32
    %3 = arith.remsi %0, %2 : i32
    %c0_i32_1 = arith.constant 0 : i32
    %4 = arith.cmpi ne, %3, %c0_i32_1 : i32
    %c0_i32_2 = arith.constant 0 : i32
    %5 = arith.cmpi slt, %3, %c0_i32_2 : i32
    %c0_i32_3 = arith.constant 0 : i32
    %6 = arith.cmpi slt, %2, %c0_i32_3 : i32
    %7 = arith.xori %5, %6 : i1
    %8 = arith.andi %7, %4 : i1
    %9 = arith.addi %3, %2 : i32
    %10 = arith.select %8, %9, %3 : i32
    %c0_i32_4 = arith.constant 0 : i32
    return %arg0, %10 : i32, i32
  }
  func.func @transform_1(%arg0: i32, %arg1: i32) -> (i32, i32) {
    %c0_i32 = arith.constant 0 : i32
    return %arg0, %arg1 : i32, i32
  }
}

</mosaic_0001>

<llo_original>
// kernel: tpu_custom_call.1
$region0: #{tpu_custom_call.1}
  #allocation0 [shape = 'u32[]', space=smem, size = 0x4, offset = 0x4, fixed_abs, tag = 'smem constant byte address 0x4 - core index']
  #allocation1 [shape = 'u32[144,128]{1,0:T(1,128)}', space=vmem, size = 0x12000, scoped, tag = 'internal scratch']
  %s0 = inlined_call_operand.hbm [shape: f32[2,512], index: 0, kind: input, shape index: {}]
  %s1 = inlined_call_operand.hbm [shape: f32[2,512], index: 1, kind: output, shape index: {}]
  %s2 = sld [smem:[#allocation0]]
  $region41: #{tpu_custom_call.1} parent=0
    _
  %s4 = ssub.s32 1, %s2
  %s5 = scalar_select 0, %s4, %s2
  $region1: #{tpu_custom_call.1} parent=0
    #allocation2 [shape = 'u8[2048]{0}', space=vmem, size = 0x800, scoped, tag = 'input window, operand 0']
    #allocation3 [shape = 's32[2]{0}', space=sflag, size = 0x8, scoped, tag = 'scoped memory for tpu_custom_call.1']
    #allocation4 [shape = 's32[2]{0}', space=sflag, size = 0x8, scoped, tag = 'scoped memory for tpu_custom_call.1']
    #allocation5 [shape = 'u8[2048]{0}', space=vmem, size = 0x800, scoped, tag = 'output window, operand 0']
    %6 = vsyncpa [#allocation3], 0
    %s7 = scalar_lea.sflag [#allocation3], 1
    %8 = vsyncpa %s7, 0
    %9 = vsyncpa [#allocation4], 0
    %s10 = scalar_lea.sflag [#allocation4], 1
    %11 = vsyncpa %s10, 0
    loop: start=0, step=1, limit=6
    $region2: #{tpu_custom_call.1} parent=1 // loop_pre_header
      _
    $region3: #{tpu_custom_call.1} parent=1 // loop_header
      %s13 = sphi 0, %s17
      %p14 = scmp.ge.s32.totalorder %s13, 6
      %s20 = sphi 0, %s32
      %s21 = sphi 0, %s28
      %s22 = sphi 0, %s20
      %s23 = sphi 0, %s21
      %s24 = sphi 0, %s22
      %s25 = sphi 0, %s23
      %s63 = sphi 0, %s65
      %s66 = sphi 0, %s63
      %s67 = sphi 0, %s66
      %s83 = sphi 0, %s67
      %s91 = sphi 0, %s93
      %s94 = sphi 0, %s91
      %s95 = sphi 0, %s94
      %s111 = sphi 0, %s95
    $region4: #{tpu_custom_call.1} parent=1 // loop_header_branch
      %16 = sbr.rel (%p14) target = $region8
    $region5: #{tpu_custom_call.1} parent=1 // loop_body
      %s18 = ssub.s32 %s13, 1
      %s19 = ssub.s32 %s13, 2
      %s26 = sadd.s32 1, %s21
      %p27 = scmp.ge.s32.totalorder %s26, 4
      %s28 = scalar_select %p27, 0, %s26
      %s29 = sadd.s32 1, %s20
      %s30 = scalar_select %p27, %s29, %s20
      %p31 = scmp.ge.s32.totalorder %s30, 1
      %s32 = scalar_select %p31, 0, %s30
      %s33 = sadd.s32 %s21, 1
      %p34 = scmp.lt.s32.totalorder %s33, 0
      %s35 = ssub.s32 0, %s33
      %s36 = scalar_select %p34, %s35, %s33
      %s37 = sand.u32 %s36, 3
      %s38 = ssub.s32 0, %s37
      %s39 = scalar_select %p34, %s38, %s37
      %p40 = scmp.ne.s32.totalorder %s39, 0
      %p41 = scmp.lt.s32.totalorder %s39, 0
      %p42 = pnand %p41, %p40
      %p43 = pneg %p42
      %s44 = sadd.s32 %s39, 4
      %s45 = scalar_select %p43, %s44, %s39
      %s46 = sadd.s32 %s28, 1
      %p47 = scmp.lt.s32.totalorder %s46, 0
      %s48 = ssub.s32 0, %s46
      %s49 = scalar_select %p47, %s48, %s46
      %s50 = sand.u32 %s49, 3
      %s51 = ssub.s32 0, %s50
      %s52 = scalar_select %p47, %s51, %s50
      %p53 = scmp.ne.s32.totalorder %s52, 0
      %p54 = scmp.lt.s32.totalorder %s52, 0
      %p55 = pnand %p54, %p53
      %p56 = pneg %p55
      %s57 = sadd.s32 %s52, 4
      %s58 = scalar_select %p56, %s57, %s52
      %s59 = ssub.s32 %s20, %s32
      %s60 = ssub.s32 %s45, %s58
      %s61 = sor.u32 %s59, %s60
      %p62 = scmp.eq.s32.totalorder %s61, 0
      %s64 = sadd.s32 %s63, 1
      %s65 = scalar_select %p62, %s63, %s64
      %p68 = pneg %p62
      %p69 = scmp.eq.s32.totalorder %s13, 3
      %p70 = por %p68, %p69
      %p71 = scmp.ne.s32.totalorder %s63, %s66
      %p72 = scmp.eq.s32.totalorder %s13, 0
      %p73 = por %p71, %p72
      %p74 = scmp.ne.s32.totalorder %s63, %s66
      %p75 = scmp.eq.s32.totalorder %s18, 3
      %p76 = por %p74, %p75
      %p77 = scmp.ne.s32.totalorder %s66, %s67
      %p78 = scmp.eq.s32.totalorder %s18, 0
      %p79 = por %p77, %p78
      %p80 = scmp.ne.s32.totalorder %s66, %s67
      %p81 = scmp.eq.s32.totalorder %s19, 3
      %p82 = por %p80, %p81
      %p84 = scmp.ne.s32.totalorder %s67, %s83
      %p85 = scmp.eq.s32.totalorder %s19, 0
      %p86 = por %p84, %p85
      %s87 = ssub.s32 %s20, %s32
      %s88 = ssub.s32 %s21, %s28
      %s89 = sor.u32 %s87, %s88
      %p90 = scmp.eq.s32.totalorder %s89, 0
      %s92 = sadd.s32 %s91, 1
      %s93 = scalar_select %p90, %s91, %s92
      %p96 = pneg %p90
      %p97 = scmp.eq.s32.totalorder %s13, 3
      %p98 = por %p96, %p97
      %p99 = scmp.ne.s32.totalorder %s91, %s94
      %p100 = scmp.eq.s32.totalorder %s13, 0
      %p101 = por %p99, %p100
      %p102 = scmp.ne.s32.totalorder %s91, %s94
      %p103 = scmp.eq.s32.totalorder %s18, 3
      %p104 = por %p102, %p103
      %p105 = scmp.ne.s32.totalorder %s94, %s95
      %p106 = scmp.eq.s32.totalorder %s18, 0
      %p107 = por %p105, %p106
      %p108 = scmp.ne.s32.totalorder %s94, %s95
      %p109 = scmp.eq.s32.totalorder %s19, 3
      %p110 = por %p108, %p109
      %p112 = scmp.ne.s32.totalorder %s95, %s111
      %p113 = scmp.eq.s32.totalorder %s19, 0
      %p114 = por %p112, %p113
      %p115 = scmp.le.s32.totalorder 1, %s13
      %p116 = scmp.lt.s32.totalorder %s13, 5
      %p117 = pnand %p115, %p116
      %p118 = pneg %p117
      // Predicated region
      $region9: #{tpu_custom_call.1} parent=5 // pred_check
        _
      $region10: #{tpu_custom_call.1} parent=5 // pred_check_branch
        %120 = sbr.rel (%p117) target = $region12
      $region11: #{tpu_custom_call.1} parent=5 // pred_region
        %s121 = ssub.s32 %s13, 1
      $region12: #{tpu_custom_call.1} parent=5 // pred_fallthru
        _
      %p122 = scmp.lt.s32.totalorder %s13, 4
      // Predicated region
      $region13: #{tpu_custom_call.1} parent=5 // pred_check
        %p123 = pneg %p122
      $region14: #{tpu_custom_call.1} parent=5 // pred_check_branch
        %125 = sbr.rel (%p123) target = $region16
      $region15: #{tpu_custom_call.1} parent=5 // pred_region
        // Predicated region
        $region17: #{tpu_custom_call.1} parent=15 // pred_check
          %p126 = pneg %p73
        $region18: #{tpu_custom_call.1} parent=15 // pred_check_branch
          %128 = sbr.rel (%p126) target = $region20
        $region19: #{tpu_custom_call.1} parent=15 // pred_region
          %s129 = sand.u32 %s63, 1
          %s130 = scalar_lea.sflag [#allocation3], %s129
          %s131 = sand.u32 %s63, 1
          %s132 = smul.addr %s131, 2
          %s133 = scalar_lea.vmem [#allocation2], %s132
          %s134 = sadd.s32 %s21, 1
          %p135 = scmp.lt.s32.totalorder %s134, 0
          %s136 = ssub.s32 0, %s134
          %s137 = scalar_select %p135, %s136, %s134
          %s138 = sand.u32 %s137, 3
          %s139 = ssub.s32 0, %s138
          %s140 = scalar_select %p135, %s139, %s138
          %p141 = scmp.ne.s32.totalorder %s140, 0
          %p142 = scmp.lt.s32.totalorder %s140, 0
          %p143 = pnand %p142, %p141
          %p144 = pneg %p143
          %s145 = sadd.s32 %s140, 4
          %s146 = scalar_select %p144, %s145, %s140
          %s148 = ssub.s32 32, 32
          %149 = vsyncadd %s130, %s148
          %s150 = smul.addr %s20, 4
          %s151 = sadd.s32 %s146, %s150
          %s152 = smul.addr %s151, 32
          %s153 = scalar_lea.hbm %s0, %s152
          %s155 = sshll.u32 %s133, 4
          %s156 = int_to_ptr.vmem [resolvable:$true] %s155
          %158 = dma.hbm_to_vmem [thread:$0]  %s153, 32, %s156, %s130
        $region20: #{tpu_custom_call.1} parent=15 // pred_fallthru
          _
      $region16: #{tpu_custom_call.1} parent=5 // pred_fallthru
        _
      %p159 = scmp.le.s32.totalorder 1, %s13
      %p160 = scmp.lt.s32.totalorder %s13, 5
      %p161 = pnand %p159, %p160
      %p162 = pneg %p161
      // Predicated region
      $region21: #{tpu_custom_call.1} parent=5 // pred_check
        _
      $region22: #{tpu_custom_call.1} parent=5 // pred_check_branch
        %164 = sbr.rel (%p161) target = $region24
      $region23: #{tpu_custom_call.1} parent=5 // pred_region
        %s165 = ssub.s32 %s13, 1
        %s166 = sand.u32 %s66, 1
        %s167 = scalar_lea.sflag [#allocation3], %s166
        %s168 = sand.u32 %s66, 1
        %s169 = smul.addr %s168, 2
        %s170 = scalar_lea.vmem [#allocation2], %s169
        // Predicated region
        $region25: #{tpu_custom_call.1} parent=23 // pred_check
          %p171 = pneg %p79
        $region26: #{tpu_custom_call.1} parent=23 // pred_check_branch
          %173 = sbr.rel (%p171) target = $region28
        $region27: #{tpu_custom_call.1} parent=23 // pred_region
          %174 = dma.done %s167, 32
        $region28: #{tpu_custom_call.1} parent=23 // pred_fallthru
          _
        %s175 = sand.u32 %s66, 1
        %s176 = scalar_lea.sflag [#allocation3], %s175
        %s177 = sand.u32 %s66, 1
        %s178 = smul.addr %s177, 2
        %s179 = scalar_lea.vmem [#allocation2], %s178
        %p180 = pneg %p79
        %p181 = pneg %p76
        %p182 = pneg %p107
        %p183 = pneg %p104
        %s184 = sand.u32 %s94, 1
        %s185 = scalar_lea.sflag [#allocation4], %s184
        %s186 = sand.u32 %s94, 1
        %s187 = smul.addr %s186, 2
        %s188 = scalar_lea.vmem [#allocation5], %s187
        %s189 = sadd.s32 %s23, 1
        %p190 = scmp.lt.s32.totalorder %s189, 0
        %s191 = ssub.s32 0, %s189
        %s192 = scalar_select %p190, %s191, %s189
        %s193 = sand.u32 %s192, 3
        %s194 = ssub.s32 0, %s193
        %s195 = scalar_select %p190, %s194, %s193
        %p196 = scmp.ne.s32.totalorder %s195, 0
        %p197 = scmp.lt.s32.totalorder %s195, 0
        %p198 = pnand %p197, %p196
        %p199 = pneg %p198
        %s200 = sadd.s32 %s195, 4
        %s201 = scalar_select %p199, %s200, %s195
        %v202 = vld [vmem:[%s170] sm:$0x3]
        %203 = vst [vmem:[%s188] sm:$0x3] %v202
        %s204 = sand.u32 %s94, 1
        %s205 = scalar_lea.sflag [#allocation4], %s204
        %s206 = sand.u32 %s94, 1
        %s207 = smul.addr %s206, 2
        %s208 = scalar_lea.vmem [#allocation5], %s207
        // Predicated region
        $region29: #{tpu_custom_call.1} parent=23 // pred_check
          %p209 = pneg %p104
        $region30: #{tpu_custom_call.1} parent=23 // pred_check_branch
          %211 = sbr.rel (%p209) target = $region32
        $region31: #{tpu_custom_call.1} parent=23 // pred_region
          %s213 = ssub.s32 32, 32
          %214 = vsyncadd %s205, %s213
          %s215 = smul.addr %s22, 4
          %s216 = sadd.s32 %s23, %s215
          %s217 = smul.addr %s216, 32
          %s218 = scalar_lea.hbm %s1, %s217
          %s220 = sshll.u32 %s208, 4
          %s221 = int_to_ptr.vmem [resolvable:$true] %s220
          %223 = dma.vmem_to_hbm [thread:$0]  %s221, 32, %s218, %s205
        $region32: #{tpu_custom_call.1} parent=23 // pred_fallthru
          _
      $region24: #{tpu_custom_call.1} parent=5 // pred_fallthru
        _
      %p224 = scmp.le.s32.totalorder 2, %s13
      // Predicated region
      $region33: #{tpu_custom_call.1} parent=5 // pred_check
        %p225 = pneg %p224
      $region34: #{tpu_custom_call.1} parent=5 // pred_check_branch
        %227 = sbr.rel (%p225) target = $region36
      $region35: #{tpu_custom_call.1} parent=5 // pred_region
        %s228 = ssub.s32 %s13, 2
        // Predicated region
        $region37: #{tpu_custom_call.1} parent=35 // pred_check
          %p229 = pneg %p110
        $region38: #{tpu_custom_call.1} parent=35 // pred_check_branch
          %231 = sbr.rel (%p229) target = $region40
        $region39: #{tpu_custom_call.1} parent=35 // pred_region
          %s232 = sand.u32 %s95, 1
          %s233 = scalar_lea.sflag [#allocation4], %s232
          %s234 = sand.u32 %s95, 1
          %s235 = smul.addr %s234, 2
          %s236 = scalar_lea.vmem [#allocation5], %s235
          %237 = dma.done %s233, 32
        $region40: #{tpu_custom_call.1} parent=35 // pred_fallthru
          _
      $region36: #{tpu_custom_call.1} parent=5 // pred_fallthru
        _
    $region6: #{tpu_custom_call.1} parent=1 // loop_footer
      %s17 = sadd.s32 1, %s13
    $region7: #{tpu_custom_call.1} parent=1 // loop_footer_branch
      %12 = sbr.rel target = $region3
    $region8: #{tpu_custom_call.1} parent=1 // loop_exit
      _
    %238 = vsyncpa [#allocation3], 1
    %s239 = scalar_lea.sflag [#allocation3], 1
    %240 = vsyncpa %s239, 1
    %241 = vsyncpa [#allocation4], 1
    %s242 = scalar_lea.sflag [#allocation4], 1
    %243 = vsyncpa %s242, 1

</llo_original>
